<compile_context>
chip_gen: v5e
topology: v5e:2x2
jax: 0.10.0
libtpu: 0.0.40
codegen_flags: <defaults>
</compile_context>

<pallas_src>
import functools

import jax
import jax.numpy as jnp
import numpy as np
from jax.experimental import pallas as pl
from jax.experimental.pallas import tpu as pltpu

GLOVE_DIM = 100
D = 100
FEAT = GLOVE_DIM + D                       # 200
F_PAD = ((FEAT + 127) // 128) * 128        # 256


def highway_kernel(x_ref, w1g_ref, b1g_ref, w2_ref, b2_ref, o_ref):
    fp = o_ref.shape[-1]                   # 256
    x = x_ref[...]                         # (TR, 256) bf16

    # Fused first matmul: [h1_pre | z] = x @ [W1 | Wg] + [b1 | bg]  (bf16 MXU, f32 acc)
    hz = jnp.dot(x, w1g_ref[...], preferred_element_type=jnp.float32) + b1g_ref[...]
    h1 = jnp.maximum(hz[:, :fp], 0.0)
    z = hz[:, fp:]

    # Second transform matmul + ReLU.
    h2 = jnp.dot(h1.astype(jnp.bfloat16), w2_ref[...],
                 preferred_element_type=jnp.float32) + b2_ref[...]
    h2 = jnp.maximum(h2, 0.0)

    # Gate sigmoid: exp + approx reciprocal both run in the EUP slot.
    p = pl.reciprocal(1.0 + jnp.exp(-z), approx=True)

    # Highway combine rewritten as x + p*(h2 - x): saves one mul + one sub per elem.
    xf = x.astype(jnp.float32)
    o_ref[...] = xf + p * (h2 - xf)


def prepare_params(w1, b1, w2, b2, wg, bg):
    """One-time parameter prep (hoisted out of the forward hot path).

    Takes PyTorch-layout (out, in) f32 weights / (out,) biases and returns
    transposed, zero-padded bf16 weights (W1 and Wg concatenated along the
    output dim) plus zero-padded f32 biases.
    """
    def pad_w(w):
        wt = jnp.asarray(w, jnp.float32).T                              # (in, out)
        return jnp.pad(wt, ((0, F_PAD - FEAT), (0, F_PAD - FEAT))).astype(jnp.bfloat16)

    def pad_b(b):
        return jnp.pad(jnp.asarray(b, jnp.float32), (0, F_PAD - FEAT))

    w1g = jnp.concatenate([pad_w(w1), pad_w(wg)], axis=1)               # (256, 512) bf16
    b1g = jnp.concatenate([pad_b(b1), pad_b(bg)]).reshape(1, 2 * F_PAD)  # (1, 512) f32
    w2p = pad_w(w2)                                                     # (256, 256) bf16
    b2p = pad_b(b2).reshape(1, F_PAD)                                   # (1, 256) f32
    return w1g, b1g, w2p, b2p


def _round_up(v, m):
    return ((v + m - 1) // m) * m


def _choose_block_rows(n_rows, max_block=1024):
    """Row-block heuristic: multiple of 8, clamped for tiny inputs, targets >= 2
    grid steps (so v7x's two TensorCores both engage), caps at max_block so per-
    step tiles stay comfortably inside VMEM on every chip (v7x incl.)."""
    n8 = _round_up(max(n_rows, 1), 8)
    half = _round_up(max(n8 // 2, 8), 8)
    return min(max_block, half)


@functools.partial(jax.jit, static_argnames=("block_rows",))
def _highway_call(x_p, w1g, b1g, w2p, b2p, *, block_rows):
    n_pad = x_p.shape[0]
    grid = (n_pad // block_rows,)
    return pl.pallas_call(
        highway_kernel,
        out_shape=jax.ShapeDtypeStruct((n_pad, F_PAD), jnp.float32),
        grid=grid,
        in_specs=[
            pl.BlockSpec((block_rows, F_PAD), lambda i: (i, 0)),    # x tile (bf16)
            pl.BlockSpec((F_PAD, 2 * F_PAD), lambda i: (0, 0)),     # [W1 | Wg] (bf16)
            pl.BlockSpec((1, 2 * F_PAD), lambda i: (0, 0)),         # [b1 | bg] (f32)
            pl.BlockSpec((F_PAD, F_PAD), lambda i: (0, 0)),         # W2 (bf16)
            pl.BlockSpec((1, F_PAD), lambda i: (0, 0)),             # b2 (f32)
        ],
        out_specs=pl.BlockSpec((block_rows, F_PAD), lambda i: (i, 0)),
        compiler_params=pltpu.CompilerParams(
            dimension_semantics=("parallel",)),
    )(x_p, w1g, b1g, w2p, b2p)


def highway_forward(x, prepared, *, max_block_rows=1024):
    """x: (..., FEAT) float32; prepared: output of prepare_params()."""
    orig_shape = x.shape
    assert x.shape[-1] == FEAT
    x2 = jnp.asarray(x).reshape(-1, FEAT)
    n = x2.shape[0]

    block_rows = _choose_block_rows(n, max_block_rows)
    n_pad = _round_up(n, block_rows)

    # bf16 x tile halves its HBM traffic; padded rows/cols are zero.
    x_p = jnp.pad(x2.astype(jnp.bfloat16),
                  ((0, n_pad - n), (0, F_PAD - FEAT)))

    out = _highway_call(x_p, *prepared, block_rows=block_rows)
    return out[:n, :FEAT].reshape(orig_shape)


def init_params(key):
    """PyTorch nn.Linear-style init: U(-1/sqrt(fan_in), 1/sqrt(fan_in))."""
    ks = jax.random.split(key, 6)
    bound = 1.0 / np.sqrt(FEAT)

    def lin(kw, kb):
        w = jax.random.uniform(kw, (FEAT, FEAT), jnp.float32, -bound, bound)
        b = jax.random.uniform(kb, (FEAT,), jnp.float32, -bound, bound)
        return w, b

    w1, b1 = lin(ks[0], ks[1])
    w2, b2 = lin(ks[2], ks[3])
    wg, bg = lin(ks[4], ks[5])
    return w1, b1, w2, b2, wg, bg


def reference(x, w1, b1, w2, b2, wg, bg):
    h1 = jnp.maximum(x @ w1.T + b1, 0.0)
    h2 = jnp.maximum(h1 @ w2.T + b2, 0.0)
    p = jax.nn.sigmoid(x @ wg.T + bg)
    return p * h2 + (1.0 - p) * x


if __name__ == "__main__":
    key = jax.random.PRNGKey(0)
    kx, kp = jax.random.split(key)

    batch, seq = 2, 8
    x = jax.random.normal(kx, (batch, seq, FEAT), jnp.float32)

    raw = init_params(kp)
    prepared = prepare_params(*raw)            # one-time weight pad/transpose/bf16

    out = jax.block_until_ready(highway_forward(x, prepared))
    ref = jax.block_until_ready(reference(x, *raw))

    assert out.shape == (batch, seq, FEAT), out.shape
    assert bool(jnp.all(jnp.isfinite(out)))
    # bf16 matmul operands / bf16-rounded x tile -> loosened tolerance vs f32 ref.
    assert bool(jnp.allclose(out, ref, atol=2e-2, rtol=2e-2)), "mismatch vs reference"

    print("KERNEL_OK")
</pallas_src>

<mosaic_0001>
module attributes {stable_mosaic.version = 11 : i64} {
  func.func @highway_kernel(%arg0: i32, %arg1: memref<8x256xbf16, #tpu.memory_space<vmem>>, %arg2: memref<256x512xbf16, #tpu.memory_space<vmem>>, %arg3: memref<1x512xf32, #tpu.memory_space<vmem>>, %arg4: memref<256x256xbf16, #tpu.memory_space<vmem>>, %arg5: memref<1x256xf32, #tpu.memory_space<vmem>>, %arg6: memref<8x256xf32, #tpu.memory_space<vmem>>) attributes {dimension_semantics = [#tpu.dimension_semantics<parallel>], iteration_bounds = array<i64: 2>, scalar_prefetch = 0 : i64, scratch_operands = 0 : i64, tpu.core_type = #tpu.core_type<tc>, window_params = [{transform_indices = @transform_0, window_bounds = array<i64: 8, 256>}, {pipeline_mode = #tpu.pipeline_mode<synchronous>, transform_indices = @transform_1, window_bounds = array<i64: 256, 512>}, {pipeline_mode = #tpu.pipeline_mode<synchronous>, transform_indices = @transform_2, window_bounds = array<i64: 1, 512>}, {pipeline_mode = #tpu.pipeline_mode<synchronous>, transform_indices = @transform_3, window_bounds = array<i64: 256, 256>}, {pipeline_mode = #tpu.pipeline_mode<synchronous>, transform_indices = @transform_4, window_bounds = array<i64: 1, 256>}, {transform_indices = @transform_5, window_bounds = array<i64: 8, 256>}]} {
    %c0 = arith.constant 0 : index
    %c0_0 = arith.constant 0 : index
    %0 = vector.load %arg1[%c0, %c0_0] : memref<8x256xbf16, #tpu.memory_space<vmem>>, vector<8x256xbf16>
    %c0_1 = arith.constant 0 : index
    %c0_2 = arith.constant 0 : index
    %1 = vector.load %arg2[%c0_1, %c0_2] : memref<256x512xbf16, #tpu.memory_space<vmem>>, vector<256x512xbf16>
    %cst = arith.constant dense<0.000000e+00> : vector<8x512xf32>
    %2 = tpu.matmul %0, %1, %cst {dimension_numbers = #tpu.dot_dimension_numbers<[1], [0], [0], [1], [0, 0, 1, 1], [], []>} : vector<8x256xbf16>, vector<256x512xbf16>, vector<8x512xf32> -> vector<8x512xf32>
    %c0_3 = arith.constant 0 : index
    %c0_4 = arith.constant 0 : index
    %3 = vector.load %arg3[%c0_3, %c0_4] : memref<1x512xf32, #tpu.memory_space<vmem>>, vector<1x512xf32>
    %4 = vector.broadcast %3 : vector<1x512xf32> to vector<8x512xf32>
    %5 = arith.addf %2, %4 : vector<8x512xf32>
    %6 = vector.extract_strided_slice %5 {offsets = [0, 0], sizes = [8, 256], strides = [1, 1]} : vector<8x512xf32> to vector<8x256xf32>
    %cst_5 = arith.constant 0.000000e+00 : f32
    %7 = vector.broadcast %cst_5 : f32 to vector<8x256xf32>
    %8 = arith.maximumf %6, %7 : vector<8x256xf32>
    %9 = vector.extract_strided_slice %5 {offsets = [0, 256], sizes = [8, 256], strides = [1, 1]} : vector<8x512xf32> to vector<8x256xf32>
    %10 = arith.truncf %8 : vector<8x256xf32> to vector<8x256xbf16>
    %c0_6 = arith.constant 0 : index
    %c0_7 = arith.constant 0 : index
    %11 = vector.load %arg4[%c0_6, %c0_7] : memref<256x256xbf16, #tpu.memory_space<vmem>>, vector<256x256xbf16>
    %cst_8 = arith.constant dense<0.000000e+00> : vector<8x256xf32>
    %12 = tpu.matmul %10, %11, %cst_8 {dimension_numbers = #tpu.dot_dimension_numbers<[1], [0], [0], [1], [0, 0, 1, 1], [], []>} : vector<8x256xbf16>, vector<256x256xbf16>, vector<8x256xf32> -> vector<8x256xf32>
    %c0_9 = arith.constant 0 : index
    %c0_10 = arith.constant 0 : index
    %13 = vector.load %arg5[%c0_9, %c0_10] : memref<1x256xf32, #tpu.memory_space<vmem>>, vector<1x256xf32>
    %14 = vector.broadcast %13 : vector<1x256xf32> to vector<8x256xf32>
    %15 = arith.addf %12, %14 : vector<8x256xf32>
    %cst_11 = arith.constant 0.000000e+00 : f32
    %16 = vector.broadcast %cst_11 : f32 to vector<8x256xf32>
    %17 = arith.maximumf %15, %16 : vector<8x256xf32>
    %cst_12 = arith.constant 0.000000e+00 : f32
    %18 = vector.broadcast %cst_12 : f32 to vector<8x256xf32>
    %19 = arith.subf %18, %9 : vector<8x256xf32>
    %20 = math.exp %19 : vector<8x256xf32>
    %cst_13 = arith.constant 1.000000e+00 : f32
    %21 = vector.broadcast %cst_13 : f32 to vector<8x256xf32>
    %22 = arith.addf %21, %20 : vector<8x256xf32>
    %23 = tpu.reciprocal %22 {approx = true} : vector<8x256xf32> -> vector<8x256xf32>
    %24 = arith.extf %0 : vector<8x256xbf16> to vector<8x256xf32>
    %25 = arith.subf %17, %24 : vector<8x256xf32>
    %26 = arith.mulf %23, %25 : vector<8x256xf32>
    %27 = arith.addf %24, %26 : vector<8x256xf32>
    %c0_14 = arith.constant 0 : index
    %c0_15 = arith.constant 0 : index
    %28 = vector.load %arg6[%c0_14, %c0_15] : memref<8x256xf32, #tpu.memory_space<vmem>>, vector<8x256xf32>
    tpu.vector_store %arg6[%c0_14, %c0_15], %27 {strides = array<i32>} : memref<8x256xf32, #tpu.memory_space<vmem>>, vector<8x256xf32>,
    return
  }
  func.func @transform_0(%arg0: i32) -> (i32, i32) {
    %c0_i32 = arith.constant 0 : i32
    %c0_i32_0 = arith.constant 0 : i32
    return %arg0, %c0_i32 : i32, i32
  }
  func.func @transform_1(%arg0: i32) -> (i32, i32) {
    %c0_i32 = arith.constant 0 : i32
    %c0_i32_0 = arith.constant 0 : i32
    %c0_i32_1 = arith.constant 0 : i32
    return %c0_i32, %c0_i32_0 : i32, i32
  }
  func.func @transform_2(%arg0: i32) -> (i32, i32) {
    %c0_i32 = arith.constant 0 : i32
    %c0_i32_0 = arith.constant 0 : i32
    %c0_i32_1 = arith.constant 0 : i32
    return %c0_i32, %c0_i32_0 : i32, i32
  }
  func.func @transform_3(%arg0: i32) -> (i32, i32) {
    %c0_i32 = arith.constant 0 : i32
    %c0_i32_0 = arith.constant 0 : i32
    %c0_i32_1 = arith.constant 0 : i32
    return %c0_i32, %c0_i32_0 : i32, i32
  }
  func.func @transform_4(%arg0: i32) -> (i32, i32) {
    %c0_i32 = arith.constant 0 : i32
    %c0_i32_0 = arith.constant 0 : i32
    %c0_i32_1 = arith.constant 0 : i32
    return %c0_i32, %c0_i32_0 : i32, i32
  }
  func.func @transform_5(%arg0: i32) -> (i32, i32) {
    %c0_i32 = arith.constant 0 : i32
    %c0_i32_0 = arith.constant 0 : i32
    return %arg0, %c0_i32 : i32, i32
  }
}

</mosaic_0001>

<llo_original>
// kernel: _highway_call.1
$region0: #{_highway_call.1}
  #allocation0 [shape = 'u32[]', space=smem, size = 0x4, offset = 0x4, fixed_abs, tag = 'smem constant byte address 0x4 - core index']
  #allocation1 [shape = 'u32[72,128]{1,0:T(1,128)}', space=vmem, size = 0x9000, scoped, tag = 'internal scratch']
  %s0 = inlined_call_operand.hbm [shape: bf16[16,256], index: 0, kind: input, shape index: {}]
  %s1 = inlined_call_operand.hbm [shape: bf16[256,512], index: 1, kind: input, shape index: {}]
  %s2 = inlined_call_operand.hbm [shape: f32[1,512], index: 2, kind: input, shape index: {}]
  %s3 = inlined_call_operand.hbm [shape: bf16[256,256], index: 3, kind: input, shape index: {}]
  %s4 = inlined_call_operand.vmem [shape: f32[1,256], index: 4, kind: input, shape index: {}]
  %s5 = inlined_call_operand.hbm [shape: f32[16,256], index: 5, kind: output, shape index: {}]
  %s6 = sld [smem:[#allocation0]]
  $region69: #{_highway_call.1} parent=0
    _
  %s8 = ssub.s32 1, %s6
  %s9 = scalar_select 0, %s8, %s6
  $region1: #{_highway_call.1} parent=0
    #allocation2 [shape = 'u8[8192]{0}', space=vmem, size = 0x2000, scoped, tag = 'input window, operand 0']
    #allocation3 [shape = 's32[2]{0}', space=sflag, size = 0x8, scoped, tag = 'scoped memory for _highway_call.1']
    #allocation4 [shape = 's32[2]{0}', space=sflag, size = 0x8, scoped, tag = 'scoped memory for _highway_call.1']
    #allocation5 [shape = 'u8[262144]{0}', space=vmem, size = 0x40000, scoped, tag = 'input window, operand 1, single buffered']
    #allocation6 [shape = 's32[1]{0}', space=sflag, size = 0x4, scoped, tag = 'scoped memory for _highway_call.1']
    #allocation7 [shape = 'u8[2048]{0}', space=vmem, size = 0x800, scoped, tag = 'input window, operand 2, single buffered']
    #allocation8 [shape = 'u8[131072]{0}', space=vmem, size = 0x20000, scoped, tag = 'input window, operand 3, single buffered']
    #allocation9 [shape = 's32[1]{0}', space=sflag, size = 0x4, scoped, tag = 'scoped memory for _highway_call.1']
    #allocation10 [shape = 'u8[16384]{0}', space=vmem, size = 0x4000, scoped, tag = 'output window, operand 0']
    %10 = vsyncpa [#allocation3], 0
    %s11 = scalar_lea.sflag [#allocation3], 1
    %12 = vsyncpa %s11, 0
    %13 = vsyncpa [#allocation6], 0
    %14 = vsyncpa [#allocation9], 0
    %15 = vsyncpa [#allocation4], 0
    %s16 = scalar_lea.sflag [#allocation4], 1
    %17 = vsyncpa %s16, 0
    loop: start=0, step=1, limit=4
    $region2: #{_highway_call.1} parent=1 // loop_pre_header
      _
    $region3: #{_highway_call.1} parent=1 // loop_header
      %s19 = sphi 0, %s23
      %p20 = scmp.ge.s32.totalorder %s19, 4
      %s29 = sphi 0, %s31
      %s32 = sphi 0, %s29
      %s33 = sphi 0, %s32
      %s49 = sphi 0, %s33
      %s53 = sphi 0, %s53
      %s55 = sphi 0, %s53
      %s56 = sphi 0, %s55
      %s70 = sphi 0, %s56
      %s74 = sphi 0, %s74
      %s76 = sphi 0, %s74
      %s77 = sphi 0, %s76
      %s91 = sphi 0, %s77
      %s95 = sphi 0, %s95
      %s97 = sphi 0, %s95
      %s98 = sphi 0, %s97
      %s112 = sphi 0, %s98
      %s116 = sphi 0, %s116
      %s118 = sphi 0, %s116
      %s119 = sphi 0, %s118
      %s133 = sphi 0, %s119
      %s139 = sphi 0, %s141
      %s142 = sphi 0, %s139
      %s143 = sphi 0, %s142
      %s159 = sphi 0, %s143
    $region4: #{_highway_call.1} parent=1 // loop_header_branch
      %22 = sbr.rel (%p20) target = $region8
    $region5: #{_highway_call.1} parent=1 // loop_body
      %s24 = ssub.s32 %s19, 1
      %s25 = ssub.s32 %s19, 2
      %s26 = sadd.s32 %s19, 1
      %s27 = ssub.s32 %s19, %s26
      %p28 = scmp.eq.s32.totalorder %s27, 0
      %s30 = sadd.s32 %s29, 1
      %s31 = scalar_select %p28, %s29, %s30
      %p34 = pneg %p28
      %p35 = scmp.eq.s32.totalorder %s19, 1
      %p36 = por %p34, %p35
      %p37 = scmp.ne.s32.totalorder %s29, %s32
      %p38 = scmp.eq.s32.totalorder %s19, 0
      %p39 = por %p37, %p38
      %p40 = scmp.ne.s32.totalorder %s29, %s32
      %p41 = scmp.eq.s32.totalorder %s24, 1
      %p42 = por %p40, %p41
      %p43 = scmp.ne.s32.totalorder %s32, %s33
      %p44 = scmp.eq.s32.totalorder %s24, 0
      %p45 = por %p43, %p44
      %p46 = scmp.ne.s32.totalorder %s32, %s33
      %p47 = scmp.eq.s32.totalorder %s25, 1
      %p48 = por %p46, %p47
      %p50 = scmp.ne.s32.totalorder %s33, %s49
      %p51 = scmp.eq.s32.totalorder %s25, 0
      %p52 = por %p50, %p51
      %s54 = sadd.s32 %s53, 1
      %p57 = scmp.eq.s32.totalorder %s19, 1
      %p58 = scmp.ne.s32.totalorder %s53, %s55
      %p59 = scmp.eq.s32.totalorder %s19, 0
      %p60 = por %p58, %p59
      %p61 = scmp.ne.s32.totalorder %s53, %s55
      %p62 = scmp.eq.s32.totalorder %s24, 1
      %p63 = por %p61, %p62
      %p64 = scmp.ne.s32.totalorder %s55, %s56
      %p65 = scmp.eq.s32.totalorder %s24, 0
      %p66 = por %p64, %p65
      %p67 = scmp.ne.s32.totalorder %s55, %s56
      %p68 = scmp.eq.s32.totalorder %s25, 1
      %p69 = por %p67, %p68
      %p71 = scmp.ne.s32.totalorder %s56, %s70
      %p72 = scmp.eq.s32.totalorder %s25, 0
      %p73 = por %p71, %p72
      %s75 = sadd.s32 %s74, 1
      %p78 = scmp.eq.s32.totalorder %s19, 1
      %p79 = scmp.ne.s32.totalorder %s74, %s76
      %p80 = scmp.eq.s32.totalorder %s19, 0
      %p81 = por %p79, %p80
      %p82 = scmp.ne.s32.totalorder %s74, %s76
      %p83 = scmp.eq.s32.totalorder %s24, 1
      %p84 = por %p82, %p83
      %p85 = scmp.ne.s32.totalorder %s76, %s77
      %p86 = scmp.eq.s32.totalorder %s24, 0
      %p87 = por %p85, %p86
      %p88 = scmp.ne.s32.totalorder %s76, %s77
      %p89 = scmp.eq.s32.totalorder %s25, 1
      %p90 = por %p88, %p89
      %p92 = scmp.ne.s32.totalorder %s77, %s91
      %p93 = scmp.eq.s32.totalorder %s25, 0
      %p94 = por %p92, %p93
      %s96 = sadd.s32 %s95, 1
      %p99 = scmp.eq.s32.totalorder %s19, 1
      %p100 = scmp.ne.s32.totalorder %s95, %s97
      %p101 = scmp.eq.s32.totalorder %s19, 0
      %p102 = por %p100, %p101
      %p103 = scmp.ne.s32.totalorder %s95, %s97
      %p104 = scmp.eq.s32.totalorder %s24, 1
      %p105 = por %p103, %p104
      %p106 = scmp.ne.s32.totalorder %s97, %s98
      %p107 = scmp.eq.s32.totalorder %s24, 0
      %p108 = por %p106, %p107
      %p109 = scmp.ne.s32.totalorder %s97, %s98
      %p110 = scmp.eq.s32.totalorder %s25, 1
      %p111 = por %p109, %p110
      %p113 = scmp.ne.s32.totalorder %s98, %s112
      %p114 = scmp.eq.s32.totalorder %s25, 0
      %p115 = por %p113, %p114
      %s117 = sadd.s32 %s116, 1
      %p120 = scmp.eq.s32.totalorder %s19, 1
      %p121 = scmp.ne.s32.totalorder %s116, %s118
      %p122 = scmp.eq.s32.totalorder %s19, 0
      %p123 = por %p121, %p122
      %p124 = scmp.ne.s32.totalorder %s116, %s118
      %p125 = scmp.eq.s32.totalorder %s24, 1
      %p126 = por %p124, %p125
      %p127 = scmp.ne.s32.totalorder %s118, %s119
      %p128 = scmp.eq.s32.totalorder %s24, 0
      %p129 = por %p127, %p128
      %p130 = scmp.ne.s32.totalorder %s118, %s119
      %p131 = scmp.eq.s32.totalorder %s25, 1
      %p132 = por %p130, %p131
      %p134 = scmp.ne.s32.totalorder %s119, %s133
      %p135 = scmp.eq.s32.totalorder %s25, 0
      %p136 = por %p134, %p135
      %s137 = ssub.s32 %s19, %s26
      %p138 = scmp.eq.s32.totalorder %s137, 0
      %s140 = sadd.s32 %s139, 1
      %s141 = scalar_select %p138, %s139, %s140
      %p144 = pneg %p138
      %p145 = scmp.eq.s32.totalorder %s19, 1
      %p146 = por %p144, %p145
      %p147 = scmp.ne.s32.totalorder %s139, %s142
      %p148 = scmp.eq.s32.totalorder %s19, 0
      %p149 = por %p147, %p148
      %p150 = scmp.ne.s32.totalorder %s139, %s142
      %p151 = scmp.eq.s32.totalorder %s24, 1
      %p152 = por %p150, %p151
      %p153 = scmp.ne.s32.totalorder %s142, %s143
      %p154 = scmp.eq.s32.totalorder %s24, 0
      %p155 = por %p153, %p154
      %p156 = scmp.ne.s32.totalorder %s142, %s143
      %p157 = scmp.eq.s32.totalorder %s25, 1
      %p158 = por %p156, %p157
      %p160 = scmp.ne.s32.totalorder %s143, %s159
      %p161 = scmp.eq.s32.totalorder %s25, 0
      %p162 = por %p160, %p161
      %p163 = scmp.le.s32.totalorder 1, %s19
      %p164 = scmp.lt.s32.totalorder %s19, 3
      %p165 = pnand %p163, %p164
      %p166 = pneg %p165
      // Predicated region
      $region9: #{_highway_call.1} parent=5 // pred_check
        _
      $region10: #{_highway_call.1} parent=5 // pred_check_branch
        %168 = sbr.rel (%p165) target = $region12
      $region11: #{_highway_call.1} parent=5 // pred_region
        %s169 = ssub.s32 %s19, 1
        // Predicated region
        $region13: #{_highway_call.1} parent=11 // pred_check
          %p170 = pneg %p66
        $region14: #{_highway_call.1} parent=11 // pred_check_branch
          %172 = sbr.rel (%p170) target = $region16
        $region15: #{_highway_call.1} parent=11 // pred_region
          %174 = vsyncadd [#allocation6], 0
          %s175 = sshll.u32 %s1, 4
          %s176 = int_to_ptr.hbm [resolvable:$true] %s175
          %s177 = sshll.u32 [#allocation5], 4
          %s178 = int_to_ptr.vmem [resolvable:$true] %s177
          %183 = dma.hbm_to_vmem [thread:$0]  %s176, 8192, %s178, [#allocation6], 256, 256, 16
        $region16: #{_highway_call.1} parent=11 // pred_fallthru
          _
        // Predicated region
        $region17: #{_highway_call.1} parent=11 // pred_check
          %p184 = pneg %p87
        $region18: #{_highway_call.1} parent=11 // pred_check_branch
          %186 = sbr.rel (%p184) target = $region20
        $region19: #{_highway_call.1} parent=11 // pred_region
          %188 = vsyncadd [#allocation6], 0
          %s190 = sshll.u32 %s2, 4
          %s191 = int_to_ptr.hbm [resolvable:$true] %s190
          %s192 = sshll.u32 [#allocation7], 4
          %s193 = int_to_ptr.vmem [resolvable:$true] %s192
          %195 = dma.hbm_to_vmem [thread:$0]  %s191, 64, %s193, [#allocation6]
        $region20: #{_highway_call.1} parent=11 // pred_fallthru
          _
        // Predicated region
        $region21: #{_highway_call.1} parent=11 // pred_check
          %p196 = pneg %p108
        $region22: #{_highway_call.1} parent=11 // pred_check_branch
          %198 = sbr.rel (%p196) target = $region24
        $region23: #{_highway_call.1} parent=11 // pred_region
          %200 = vsyncadd [#allocation9], 0
          %s201 = sshll.u32 %s3, 4
          %s202 = int_to_ptr.hbm [resolvable:$true] %s201
          %s203 = sshll.u32 [#allocation8], 4
          %s204 = int_to_ptr.vmem [resolvable:$true] %s203
          %209 = dma.hbm_to_vmem [thread:$0]  %s202, 4096, %s204, [#allocation9], 128, 128, 8
        $region24: #{_highway_call.1} parent=11 // pred_fallthru
          _
        // Predicated region
        $region25: #{_highway_call.1} parent=11 // pred_check
          %p210 = pneg %p129
        $region26: #{_highway_call.1} parent=11 // pred_check_branch
          %212 = sbr.rel (%p210) target = $region28
        $region27: #{_highway_call.1} parent=11 // pred_region
          _
        $region28: #{_highway_call.1} parent=11 // pred_fallthru
          _
      $region12: #{_highway_call.1} parent=5 // pred_fallthru
        _
      %p213 = scmp.lt.s32.totalorder %s19, 2
      // Predicated region
      $region29: #{_highway_call.1} parent=5 // pred_check
        %p214 = pneg %p213
      $region30: #{_highway_call.1} parent=5 // pred_check_branch
        %216 = sbr.rel (%p214) target = $region32
      $region31: #{_highway_call.1} parent=5 // pred_region
        // Predicated region
        $region33: #{_highway_call.1} parent=31 // pred_check
          %p217 = pneg %p39
        $region34: #{_highway_call.1} parent=31 // pred_check_branch
          %219 = sbr.rel (%p217) target = $region36
        $region35: #{_highway_call.1} parent=31 // pred_region
          %s220 = sand.u32 %s29, 1
          %s221 = scalar_lea.sflag [#allocation3], %s220
          %s222 = sand.u32 %s29, 1
          %s223 = smul.addr %s222, 8
          %s224 = scalar_lea.vmem [#allocation2], %s223
          %226 = vsyncadd %s221, 0
          %s227 = smul.addr %s19, 2
          %s228 = smul.addr %s227, 4
          %s229 = scalar_lea.hbm %s0, %s228
          %s231 = sshll.u32 %s229, 4
          %s232 = int_to_ptr.hbm [resolvable:$true] %s231
          %s233 = sshll.u32 %s224, 4
          %s234 = int_to_ptr.vmem [resolvable:$true] %s233
          %236 = dma.hbm_to_vmem [thread:$0]  %s232, 128, %s234, %s221
        $region36: #{_highway_call.1} parent=31 // pred_fallthru
          _
      $region32: #{_highway_call.1} parent=5 // pred_fallthru
        _
      %p237 = scmp.le.s32.totalorder 1, %s19
      %p238 = scmp.lt.s32.totalorder %s19, 3
      %p239 = pnand %p237, %p238
      %p240 = pneg %p239
      // Predicated region
      $region37: #{_highway_call.1} parent=5 // pred_check
        _
      $region38: #{_highway_call.1} parent=5 // pred_check_branch
        %242 = sbr.rel (%p239) target = $region40
      $region39: #{_highway_call.1} parent=5 // pred_region
        %s243 = ssub.s32 %s19, 1
        %s244 = sand.u32 %s32, 1
        %s245 = scalar_lea.sflag [#allocation3], %s244
        %s246 = sand.u32 %s32, 1
        %s247 = smul.addr %s246, 8
        %s248 = scalar_lea.vmem [#allocation2], %s247
        // Predicated region
        $region41: #{_highway_call.1} parent=39 // pred_check
          %p249 = pneg %p45
        $region42: #{_highway_call.1} parent=39 // pred_check_branch
          %251 = sbr.rel (%p249) target = $region44
        $region43: #{_highway_call.1} parent=39 // pred_region
          %253 = dma.done %s245, 128
        $region44: #{_highway_call.1} parent=39 // pred_fallthru
          _
        // Predicated region
        $region45: #{_highway_call.1} parent=39 // pred_check
          %p254 = pneg %p66
        $region46: #{_highway_call.1} parent=39 // pred_check_branch
          %256 = sbr.rel (%p254) target = $region48
        $region47: #{_highway_call.1} parent=39 // pred_region
          %258 = dma.done [#allocation6], 8192
        $region48: #{_highway_call.1} parent=39 // pred_fallthru
          _
        // Predicated region
        $region49: #{_highway_call.1} parent=39 // pred_check
          %p259 = pneg %p87
        $region50: #{_highway_call.1} parent=39 // pred_check_branch
          %261 = sbr.rel (%p259) target = $region52
        $region51: #{_highway_call.1} parent=39 // pred_region
          %263 = dma.done [#allocation6], 64
        $region52: #{_highway_call.1} parent=39 // pred_fallthru
          _
        // Predicated region
        $region53: #{_highway_call.1} parent=39 // pred_check
          %p264 = pneg %p108
        $region54: #{_highway_call.1} parent=39 // pred_check_branch
          %266 = sbr.rel (%p264) target = $region56
        $region55: #{_highway_call.1} parent=39 // pred_region
          %268 = dma.done [#allocation9], 4096
        $region56: #{_highway_call.1} parent=39 // pred_fallthru
          _
        %s269 = sand.u32 %s32, 1
        %s270 = scalar_lea.sflag [#allocation3], %s269
        %s271 = sand.u32 %s32, 1
        %s272 = smul.addr %s271, 8
        %s273 = scalar_lea.vmem [#allocation2], %s272
        %p274 = pneg %p45
        %p275 = pneg %p42
        %p276 = pneg %p66
        %p277 = pneg %p63
        %p278 = pneg %p87
        %p279 = pneg %p84
        %p280 = pneg %p108
        %p281 = pneg %p105
        %p282 = pneg %p129
        %p283 = pneg %p126
        %p284 = pneg %p155
        %p285 = pneg %p152
        %s286 = sand.u32 %s142, 1
        %s287 = scalar_lea.sflag [#allocation4], %s286
        %s288 = sand.u32 %s142, 1
        %s289 = smul.addr %s288, 16
        %s290 = scalar_lea.vmem [#allocation10], %s289
        %v291 = vld [vmem:[%s248] sm:$0xff]
        %v292 = vld [vmem:[#allocation5] sm:$0xff]
        %v293 = vld [vmem:[#allocation5 + $0x8] sm:$0xff]
        %v294 = vld [vmem:[#allocation5 + $0x10] sm:$0xff]
        %v295 = vld [vmem:[#allocation5 + $0x18] sm:$0xff]
        %v296 = vld [vmem:[#allocation5 + $0x20] sm:$0xff]
        %v297 = vld [vmem:[#allocation5 + $0x28] sm:$0xff]
        %v298 = vld [vmem:[#allocation5 + $0x30] sm:$0xff]
        %v299 = vld [vmem:[#allocation5 + $0x38] sm:$0xff]
        %v300 = vld [vmem:[#allocation5 + $0x40] sm:$0xff]
        %v301 = vld [vmem:[#allocation5 + $0x48] sm:$0xff]
        %v302 = vld [vmem:[#allocation5 + $0x50] sm:$0xff]
        %v303 = vld [vmem:[#allocation5 + $0x58] sm:$0xff]
        %v304 = vld [vmem:[#allocation5 + $0x60] sm:$0xff]
        %v305 = vld [vmem:[#allocation5 + $0x68] sm:$0xff]
        %v306 = vld [vmem:[#allocation5 + $0x70] sm:$0xff]
        %v307 = vld [vmem:[#allocation5 + $0x78] sm:$0xff]
        %v308 = vld [vmem:[#allocation5 + $0x80] sm:$0xff]
        %v309 = vld [vmem:[#allocation5 + $0x88] sm:$0xff]
        %v310 = vld [vmem:[#allocation5 + $0x90] sm:$0xff]
        %v311 = vld [vmem:[#allocation5 + $0x98] sm:$0xff]
        %v312 = vld [vmem:[#allocation5 + $0xa0] sm:$0xff]
        %v313 = vld [vmem:[#allocation5 + $0xa8] sm:$0xff]
        %v314 = vld [vmem:[#allocation5 + $0xb0] sm:$0xff]
        %v315 = vld [vmem:[#allocation5 + $0xb8] sm:$0xff]
        %v316 = vld [vmem:[#allocation5 + $0xc0] sm:$0xff]
        %v317 = vld [vmem:[#allocation5 + $0xc8] sm:$0xff]
        %v318 = vld [vmem:[#allocation5 + $0xd0] sm:$0xff]
        %v319 = vld [vmem:[#allocation5 + $0xd8] sm:$0xff]
        %v320 = vld [vmem:[#allocation5 + $0xe0] sm:$0xff]
        %v321 = vld [vmem:[#allocation5 + $0xe8] sm:$0xff]
        %v322 = vld [vmem:[#allocation5 + $0xf0] sm:$0xff]
        %v323 = vld [vmem:[#allocation5 + $0xf8] sm:$0xff]
        %v324 = vld [vmem:[#allocation5 + $0x100] sm:$0xff]
        %v325 = vld [vmem:[#allocation5 + $0x108] sm:$0xff]
        %v326 = vld [vmem:[#allocation5 + $0x110] sm:$0xff]
        %v327 = vld [vmem:[#allocation5 + $0x118] sm:$0xff]
        %v328 = vld [vmem:[#allocation5 + $0x120] sm:$0xff]
        %v329 = vld [vmem:[#allocation5 + $0x128] sm:$0xff]
        %v330 = vld [vmem:[#allocation5 + $0x130] sm:$0xff]
        %v331 = vld [vmem:[#allocation5 + $0x138] sm:$0xff]
        %v332 = vld [vmem:[#allocation5 + $0x140] sm:$0xff]
        %v333 = vld [vmem:[#allocation5 + $0x148] sm:$0xff]
        %v334 = vld [vmem:[#allocation5 + $0x150] sm:$0xff]
        %v335 = vld [vmem:[#allocation5 + $0x158] sm:$0xff]
        %v336 = vld [vmem:[#allocation5 + $0x160] sm:$0xff]
        %v337 = vld [vmem:[#allocation5 + $0x168] sm:$0xff]
        %v338 = vld [vmem:[#allocation5 + $0x170] sm:$0xff]
        %v339 = vld [vmem:[#allocation5 + $0x178] sm:$0xff]
        %v340 = vld [vmem:[#allocation5 + $0x180] sm:$0xff]
        %v341 = vld [vmem:[#allocation5 + $0x188] sm:$0xff]
        %v342 = vld [vmem:[#allocation5 + $0x190] sm:$0xff]
        %v343 = vld [vmem:[#allocation5 + $0x198] sm:$0xff]
        %v344 = vld [vmem:[#allocation5 + $0x1a0] sm:$0xff]
        %v345 = vld [vmem:[#allocation5 + $0x1a8] sm:$0xff]
        %v346 = vld [vmem:[#allocation5 + $0x1b0] sm:$0xff]
        %v347 = vld [vmem:[#allocation5 + $0x1b8] sm:$0xff]
        %v348 = vld [vmem:[#allocation5 + $0x1c0] sm:$0xff]
        %v349 = vld [vmem:[#allocation5 + $0x1c8] sm:$0xff]
        %v350 = vld [vmem:[#allocation5 + $0x1d0] sm:$0xff]
        %v351 = vld [vmem:[#allocation5 + $0x1d8] sm:$0xff]
        %v352 = vld [vmem:[#allocation5 + $0x1e0] sm:$0xff]
        %v353 = vld [vmem:[#allocation5 + $0x1e8] sm:$0xff]
        %v354 = vld [vmem:[#allocation5 + $0x1f0] sm:$0xff]
        %v355 = vld [vmem:[#allocation5 + $0x1f8] sm:$0xff]
        %v356 = vld [vmem:[#allocation7] sm:$0xf]
        %v358 = vperm.slane %v356, 0
        %v359 = vperm.slane %v356, 1
        %v360 = vperm.slane %v356, 2
        %v361 = vperm.slane %v356, 3
        %v367 = vunpack.c.l.b16 %v291
        %v368 = vunpack.c.h.b16 %v291
        %v369 = vpack.c.b16 %v367, %v367
        %v370 = vpack.c.b16 %v368, %v368
        %v437 = vunpack.c.l.b16 %v292
        %v438 = vunpack.c.h.b16 %v292
        %v439 = vunpack.c.l.b16 %v293
        %v440 = vunpack.c.h.b16 %v293
        %v441 = vunpack.c.l.b16 %v294
        %v442 = vunpack.c.h.b16 %v294
        %v443 = vunpack.c.l.b16 %v295
        %v444 = vunpack.c.h.b16 %v295
        %v445 = vunpack.c.l.b16 %v296
        %v446 = vunpack.c.h.b16 %v296
        %v447 = vunpack.c.l.b16 %v297
        %v448 = vunpack.c.h.b16 %v297
        %v449 = vunpack.c.l.b16 %v298
        %v450 = vunpack.c.h.b16 %v298
        %v451 = vunpack.c.l.b16 %v299
        %v452 = vunpack.c.h.b16 %v299
        %v453 = vunpack.c.l.b16 %v300
        %v454 = vunpack.c.h.b16 %v300
        %v455 = vunpack.c.l.b16 %v301
        %v456 = vunpack.c.h.b16 %v301
        %v457 = vunpack.c.l.b16 %v302
        %v458 = vunpack.c.h.b16 %v302
        %v459 = vunpack.c.l.b16 %v303
        %v460 = vunpack.c.h.b16 %v303
        %v461 = vunpack.c.l.b16 %v304
        %v462 = vunpack.c.h.b16 %v304
        %v463 = vunpack.c.l.b16 %v305
        %v464 = vunpack.c.h.b16 %v305
        %v465 = vunpack.c.l.b16 %v306
        %v466 = vunpack.c.h.b16 %v306
        %v467 = vunpack.c.l.b16 %v307
        %v468 = vunpack.c.h.b16 %v307
        %v469 = vunpack.c.l.b16 %v308
        %v470 = vunpack.c.h.b16 %v308
        %v471 = vunpack.c.l.b16 %v309
        %v472 = vunpack.c.h.b16 %v309
        %v473 = vunpack.c.l.b16 %v310
        %v474 = vunpack.c.h.b16 %v310
        %v475 = vunpack.c.l.b16 %v311
        %v476 = vunpack.c.h.b16 %v311
        %v477 = vunpack.c.l.b16 %v312
        %v478 = vunpack.c.h.b16 %v312
        %v479 = vunpack.c.l.b16 %v313
        %v480 = vunpack.c.h.b16 %v313
        %v481 = vunpack.c.l.b16 %v314
        %v482 = vunpack.c.h.b16 %v314
        %v483 = vunpack.c.l.b16 %v315
        %v484 = vunpack.c.h.b16 %v315
        %v485 = vunpack.c.l.b16 %v316
        %v486 = vunpack.c.h.b16 %v316
        %v487 = vunpack.c.l.b16 %v317
        %v488 = vunpack.c.h.b16 %v317
        %v489 = vunpack.c.l.b16 %v318
        %v490 = vunpack.c.h.b16 %v318
        %v491 = vunpack.c.l.b16 %v319
        %v492 = vunpack.c.h.b16 %v319
        %v493 = vunpack.c.l.b16 %v320
        %v494 = vunpack.c.h.b16 %v320
        %v495 = vunpack.c.l.b16 %v321
        %v496 = vunpack.c.h.b16 %v321
        %v497 = vunpack.c.l.b16 %v322
        %v498 = vunpack.c.h.b16 %v322
        %v499 = vunpack.c.l.b16 %v323
        %v500 = vunpack.c.h.b16 %v323
        %v501 = vunpack.c.l.b16 %v324
        %v502 = vunpack.c.h.b16 %v324
        %v503 = vunpack.c.l.b16 %v325
        %v504 = vunpack.c.h.b16 %v325
        %v505 = vunpack.c.l.b16 %v326
        %v506 = vunpack.c.h.b16 %v326
        %v507 = vunpack.c.l.b16 %v327
        %v508 = vunpack.c.h.b16 %v327
        %v509 = vunpack.c.l.b16 %v328
        %v510 = vunpack.c.h.b16 %v328
        %v511 = vunpack.c.l.b16 %v329
        %v512 = vunpack.c.h.b16 %v329
        %v513 = vunpack.c.l.b16 %v330
        %v514 = vunpack.c.h.b16 %v330
        %v515 = vunpack.c.l.b16 %v331
        %v516 = vunpack.c.h.b16 %v331
        %v517 = vunpack.c.l.b16 %v332
        %v518 = vunpack.c.h.b16 %v332
        %v519 = vunpack.c.l.b16 %v333
        %v520 = vunpack.c.h.b16 %v333
        %v521 = vunpack.c.l.b16 %v334
        %v522 = vunpack.c.h.b16 %v334
        %v523 = vunpack.c.l.b16 %v335
        %v524 = vunpack.c.h.b16 %v335
        %v525 = vunpack.c.l.b16 %v336
        %v526 = vunpack.c.h.b16 %v336
        %v527 = vunpack.c.l.b16 %v337
        %v528 = vunpack.c.h.b16 %v337
        %v529 = vunpack.c.l.b16 %v338
        %v530 = vunpack.c.h.b16 %v338
        %v531 = vunpack.c.l.b16 %v339
        %v532 = vunpack.c.h.b16 %v339
        %v533 = vunpack.c.l.b16 %v340
        %v534 = vunpack.c.h.b16 %v340
        %v535 = vunpack.c.l.b16 %v341
        %v536 = vunpack.c.h.b16 %v341
        %v537 = vunpack.c.l.b16 %v342
        %v538 = vunpack.c.h.b16 %v342
        %v539 = vunpack.c.l.b16 %v343
        %v540 = vunpack.c.h.b16 %v343
        %v541 = vunpack.c.l.b16 %v344
        %v542 = vunpack.c.h.b16 %v344
        %v543 = vunpack.c.l.b16 %v345
        %v544 = vunpack.c.h.b16 %v345
        %v545 = vunpack.c.l.b16 %v346
        %v546 = vunpack.c.h.b16 %v346
        %v547 = vunpack.c.l.b16 %v347
        %v548 = vunpack.c.h.b16 %v347
        %v549 = vunpack.c.l.b16 %v348
        %v550 = vunpack.c.h.b16 %v348
        %v551 = vunpack.c.l.b16 %v349
        %v552 = vunpack.c.h.b16 %v349
        %v553 = vunpack.c.l.b16 %v350
        %v554 = vunpack.c.h.b16 %v350
        %v555 = vunpack.c.l.b16 %v351
        %v556 = vunpack.c.h.b16 %v351
        %v557 = vunpack.c.l.b16 %v352
        %v558 = vunpack.c.h.b16 %v352
        %v559 = vunpack.c.l.b16 %v353
        %v560 = vunpack.c.h.b16 %v353
        %v561 = vunpack.c.l.b16 %v354
        %v562 = vunpack.c.h.b16 %v354
        %v563 = vunpack.c.l.b16 %v355
        %v564 = vunpack.c.h.b16 %v355
        %v565 = vpack.c.b16 %v441, %v437
        %v566 = vpack.c.b16 %v442, %v438
        %v567 = vpack.c.b16 %v443, %v439
        %v568 = vpack.c.b16 %v444, %v440
        %v569 = vpack.c.b16 %v449, %v445
        %v570 = vpack.c.b16 %v450, %v446
        %v571 = vpack.c.b16 %v451, %v447
        %v572 = vpack.c.b16 %v452, %v448
        %v573 = vpack.c.b16 %v457, %v453
        %v574 = vpack.c.b16 %v458, %v454
        %v575 = vpack.c.b16 %v459, %v455
        %v576 = vpack.c.b16 %v460, %v456
        %v577 = vpack.c.b16 %v465, %v461
        %v578 = vpack.c.b16 %v466, %v462
        %v579 = vpack.c.b16 %v467, %v463
        %v580 = vpack.c.b16 %v468, %v464
        %v581 = vpack.c.b16 %v473, %v469
        %v582 = vpack.c.b16 %v474, %v470
        %v583 = vpack.c.b16 %v475, %v471
        %v584 = vpack.c.b16 %v476, %v472
        %v585 = vpack.c.b16 %v481, %v477
        %v586 = vpack.c.b16 %v482, %v478
        %v587 = vpack.c.b16 %v483, %v479
        %v588 = vpack.c.b16 %v484, %v480
        %v589 = vpack.c.b16 %v489, %v485
        %v590 = vpack.c.b16 %v490, %v486
        %v591 = vpack.c.b16 %v491, %v487
        %v592 = vpack.c.b16 %v492, %v488
        %v593 = vpack.c.b16 %v497, %v493
        %v594 = vpack.c.b16 %v498, %v494
        %v595 = vpack.c.b16 %v499, %v495
        %v596 = vpack.c.b16 %v500, %v496
        %v597 = vpack.c.b16 %v505, %v501
        %v598 = vpack.c.b16 %v506, %v502
        %v599 = vpack.c.b16 %v507, %v503
        %v600 = vpack.c.b16 %v508, %v504
        %v601 = vpack.c.b16 %v513, %v509
        %v602 = vpack.c.b16 %v514, %v510
        %v603 = vpack.c.b16 %v515, %v511
        %v604 = vpack.c.b16 %v516, %v512
        %v605 = vpack.c.b16 %v521, %v517
        %v606 = vpack.c.b16 %v522, %v518
        %v607 = vpack.c.b16 %v523, %v519
        %v608 = vpack.c.b16 %v524, %v520
        %v609 = vpack.c.b16 %v529, %v525
        %v610 = vpack.c.b16 %v530, %v526
        %v611 = vpack.c.b16 %v531, %v527
        %v612 = vpack.c.b16 %v532, %v528
        %v613 = vpack.c.b16 %v537, %v533
        %v614 = vpack.c.b16 %v538, %v534
        %v615 = vpack.c.b16 %v539, %v535
        %v616 = vpack.c.b16 %v540, %v536
        %v617 = vpack.c.b16 %v545, %v541
        %v618 = vpack.c.b16 %v546, %v542
        %v619 = vpack.c.b16 %v547, %v543
        %v620 = vpack.c.b16 %v548, %v544
        %v621 = vpack.c.b16 %v553, %v549
        %v622 = vpack.c.b16 %v554, %v550
        %v623 = vpack.c.b16 %v555, %v551
        %v624 = vpack.c.b16 %v556, %v552
        %v625 = vpack.c.b16 %v561, %v557
        %v626 = vpack.c.b16 %v562, %v558
        %v627 = vpack.c.b16 %v563, %v559
        %v628 = vpack.c.b16 %v564, %v560
        %693 = vmatpush.bf16.msra.mxu0 %v593
        %694 = vmatpush.bf16.msra.mxu0 %v589
        %695 = vmatpush.bf16.msra.mxu0 %v585
        %696 = vmatpush.bf16.msra.mxu0 %v581
        %697 = vmatpush.bf16.msra.mxu0 %v577
        %698 = vmatpush.bf16.msra.mxu0 %v573
        %699 = vmatpush.bf16.msra.mxu0 %v569
        %700 = vmatpush.bf16.msra.mxu0 %v565
        %701 = vmatmul.bf16.gmra.mxu0 %v369
        %v702 = vpop.f32.mrf.mxu0
        %v703 = vadd.f32 %v358, %v702
        %v704 = vpop.f32.mrf.mxu0
        %705 = vdwg.mxu0
        %706 = vmatpush.bf16.msra.mxu0 %v625
        %707 = vmatpush.bf16.msra.mxu0 %v621
        %708 = vmatpush.bf16.msra.mxu0 %v617
        %709 = vmatpush.bf16.msra.mxu0 %v613
        %710 = vmatpush.bf16.msra.mxu0 %v609
        %711 = vmatpush.bf16.msra.mxu0 %v605
        %712 = vmatpush.bf16.msra.mxu0 %v601
        %713 = vmatpush.bf16.msra.mxu0 %v597
        %714 = vmatmul.bf16.gmra.mxu0 %v370
        %v715 = vpop.f32.mrf.mxu0
        %v716 = vadd.f32 %v703, %v715
        %v717 = vpop.f32.mrf.mxu0
        %718 = vdwg.mxu0
        %719 = vmatpush.bf16.msra.mxu0 %v594
        %720 = vmatpush.bf16.msra.mxu0 %v590
        %721 = vmatpush.bf16.msra.mxu0 %v586
        %722 = vmatpush.bf16.msra.mxu0 %v582
        %723 = vmatpush.bf16.msra.mxu0 %v578
        %724 = vmatpush.bf16.msra.mxu0 %v574
        %725 = vmatpush.bf16.msra.mxu0 %v570
        %726 = vmatpush.bf16.msra.mxu0 %v566
        %727 = vmatmul.bf16.gmra.mxu0 %v369
        %v728 = vpop.f32.mrf.mxu0
        %v729 = vadd.f32 %v359, %v728
        %v730 = vpop.f32.mrf.mxu0
        %731 = vdwg.mxu0
        %732 = vmatpush.bf16.msra.mxu0 %v626
        %733 = vmatpush.bf16.msra.mxu0 %v622
        %734 = vmatpush.bf16.msra.mxu0 %v618
        %735 = vmatpush.bf16.msra.mxu0 %v614
        %736 = vmatpush.bf16.msra.mxu0 %v610
        %737 = vmatpush.bf16.msra.mxu0 %v606
        %738 = vmatpush.bf16.msra.mxu0 %v602
        %739 = vmatpush.bf16.msra.mxu0 %v598
        %740 = vmatmul.bf16.gmra.mxu0 %v370
        %v741 = vpop.f32.mrf.mxu0
        %v742 = vadd.f32 %v729, %v741
        %v743 = vpop.f32.mrf.mxu0
        %744 = vdwg.mxu0
        %745 = vmatpush.bf16.msra.mxu0 %v595
        %746 = vmatpush.bf16.msra.mxu0 %v591
        %747 = vmatpush.bf16.msra.mxu0 %v587
        %748 = vmatpush.bf16.msra.mxu0 %v583
        %749 = vmatpush.bf16.msra.mxu0 %v579
        %750 = vmatpush.bf16.msra.mxu0 %v575
        %751 = vmatpush.bf16.msra.mxu0 %v571
        %752 = vmatpush.bf16.msra.mxu0 %v567
        %753 = vmatmul.bf16.gmra.mxu0 %v369
        %v754 = vpop.f32.mrf.mxu0
        %v755 = vadd.f32 %v360, %v754
        %v756 = vpop.f32.mrf.mxu0
        %757 = vdwg.mxu0
        %758 = vmatpush.bf16.msra.mxu0 %v627
        %759 = vmatpush.bf16.msra.mxu0 %v623
        %760 = vmatpush.bf16.msra.mxu0 %v619
        %761 = vmatpush.bf16.msra.mxu0 %v615
        %762 = vmatpush.bf16.msra.mxu0 %v611
        %763 = vmatpush.bf16.msra.mxu0 %v607
        %764 = vmatpush.bf16.msra.mxu0 %v603
        %765 = vmatpush.bf16.msra.mxu0 %v599
        %766 = vmatmul.bf16.gmra.mxu0 %v370
        %v767 = vpop.f32.mrf.mxu0
        %v768 = vadd.f32 %v755, %v767
        %v769 = vpop.f32.mrf.mxu0
        %770 = vdwg.mxu0
        %771 = vmatpush.bf16.msra.mxu0 %v596
        %772 = vmatpush.bf16.msra.mxu0 %v592
        %773 = vmatpush.bf16.msra.mxu0 %v588
        %774 = vmatpush.bf16.msra.mxu0 %v584
        %775 = vmatpush.bf16.msra.mxu0 %v580
        %776 = vmatpush.bf16.msra.mxu0 %v576
        %777 = vmatpush.bf16.msra.mxu0 %v572
        %778 = vmatpush.bf16.msra.mxu0 %v568
        %779 = vmatmul.bf16.gmra.mxu0 %v369
        %v780 = vpop.f32.mrf.mxu0
        %v781 = vadd.f32 %v361, %v780
        %v782 = vpop.f32.mrf.mxu0
        %783 = vdwg.mxu0
        %784 = vmatpush.bf16.msra.mxu0 %v628
        %785 = vmatpush.bf16.msra.mxu0 %v624
        %786 = vmatpush.bf16.msra.mxu0 %v620
        %787 = vmatpush.bf16.msra.mxu0 %v616
        %788 = vmatpush.bf16.msra.mxu0 %v612
        %789 = vmatpush.bf16.msra.mxu0 %v608
        %790 = vmatpush.bf16.msra.mxu0 %v604
        %791 = vmatpush.bf16.msra.mxu0 %v600
        %792 = vmatmul.bf16.gmra.mxu0 %v370
        %v793 = vpop.f32.mrf.mxu0
        %v794 = vadd.f32 %v781, %v793
        %v795 = vpop.f32.mrf.mxu0
        %796 = vdwg.mxu0
        %v797 = vmax.f32 %v716, 0.0
        %v798 = vmax.f32 %v742, 0.0
        %v799 = vpack.c.bf16 %v797, %v797
        %v800 = vpack.c.bf16 %v798, %v798
        %v801 = vld [vmem:[#allocation8] sm:$0xff]
        %v802 = vld [vmem:[#allocation8 + $0x8] sm:$0xff]
        %v803 = vld [vmem:[#allocation8 + $0x10] sm:$0xff]
        %v804 = vld [vmem:[#allocation8 + $0x18] sm:$0xff]
        %v805 = vld [vmem:[#allocation8 + $0x20] sm:$0xff]
        %v806 = vld [vmem:[#allocation8 + $0x28] sm:$0xff]
        %v807 = vld [vmem:[#allocation8 + $0x30] sm:$0xff]
        %v808 = vld [vmem:[#allocation8 + $0x38] sm:$0xff]
        %v809 = vld [vmem:[#allocation8 + $0x40] sm:$0xff]
        %v810 = vld [vmem:[#allocation8 + $0x48] sm:$0xff]
        %v811 = vld [vmem:[#allocation8 + $0x50] sm:$0xff]
        %v812 = vld [vmem:[#allocation8 + $0x58] sm:$0xff]
        %v813 = vld [vmem:[#allocation8 + $0x60] sm:$0xff]
        %v814 = vld [vmem:[#allocation8 + $0x68] sm:$0xff]
        %v815 = vld [vmem:[#allocation8 + $0x70] sm:$0xff]
        %v816 = vld [vmem:[#allocation8 + $0x78] sm:$0xff]
        %v817 = vld [vmem:[#allocation8 + $0x80] sm:$0xff]
        %v818 = vld [vmem:[#allocation8 + $0x88] sm:$0xff]
        %v819 = vld [vmem:[#allocation8 + $0x90] sm:$0xff]
        %v820 = vld [vmem:[#allocation8 + $0x98] sm:$0xff]
        %v821 = vld [vmem:[#allocation8 + $0xa0] sm:$0xff]
        %v822 = vld [vmem:[#allocation8 + $0xa8] sm:$0xff]
        %v823 = vld [vmem:[#allocation8 + $0xb0] sm:$0xff]
        %v824 = vld [vmem:[#allocation8 + $0xb8] sm:$0xff]
        %v825 = vld [vmem:[#allocation8 + $0xc0] sm:$0xff]
        %v826 = vld [vmem:[#allocation8 + $0xc8] sm:$0xff]
        %v827 = vld [vmem:[#allocation8 + $0xd0] sm:$0xff]
        %v828 = vld [vmem:[#allocation8 + $0xd8] sm:$0xff]
        %v829 = vld [vmem:[#allocation8 + $0xe0] sm:$0xff]
        %v830 = vld [vmem:[#allocation8 + $0xe8] sm:$0xff]
        %v831 = vld [vmem:[#allocation8 + $0xf0] sm:$0xff]
        %v832 = vld [vmem:[#allocation8 + $0xf8] sm:$0xff]
        %v833 = vld [vmem:[%s4] sm:$0x3]
        %v835 = vperm.slane %v833, 0
        %v836 = vperm.slane %v833, 1
        %v871 = vunpack.c.l.b16 %v801
        %v872 = vunpack.c.h.b16 %v801
        %v873 = vunpack.c.l.b16 %v802
        %v874 = vunpack.c.h.b16 %v802
        %v875 = vunpack.c.l.b16 %v803
        %v876 = vunpack.c.h.b16 %v803
        %v877 = vunpack.c.l.b16 %v804
        %v878 = vunpack.c.h.b16 %v804
        %v879 = vunpack.c.l.b16 %v805
        %v880 = vunpack.c.h.b16 %v805
        %v881 = vunpack.c.l.b16 %v806
        %v882 = vunpack.c.h.b16 %v806
        %v883 = vunpack.c.l.b16 %v807
        %v884 = vunpack.c.h.b16 %v807
        %v885 = vunpack.c.l.b16 %v808
        %v886 = vunpack.c.h.b16 %v808
        %v887 = vunpack.c.l.b16 %v809
        %v888 = vunpack.c.h.b16 %v809
        %v889 = vunpack.c.l.b16 %v810
        %v890 = vunpack.c.h.b16 %v810
        %v891 = vunpack.c.l.b16 %v811
        %v892 = vunpack.c.h.b16 %v811
        %v893 = vunpack.c.l.b16 %v812
        %v894 = vunpack.c.h.b16 %v812
        %v895 = vunpack.c.l.b16 %v813
        %v896 = vunpack.c.h.b16 %v813
        %v897 = vunpack.c.l.b16 %v814
        %v898 = vunpack.c.h.b16 %v814
        %v899 = vunpack.c.l.b16 %v815
        %v900 = vunpack.c.h.b16 %v815
        %v901 = vunpack.c.l.b16 %v816
        %v902 = vunpack.c.h.b16 %v816
        %v903 = vunpack.c.l.b16 %v817
        %v904 = vunpack.c.h.b16 %v817
        %v905 = vunpack.c.l.b16 %v818
        %v906 = vunpack.c.h.b16 %v818
        %v907 = vunpack.c.l.b16 %v819
        %v908 = vunpack.c.h.b16 %v819
        %v909 = vunpack.c.l.b16 %v820
        %v910 = vunpack.c.h.b16 %v820
        %v911 = vunpack.c.l.b16 %v821
        %v912 = vunpack.c.h.b16 %v821
        %v913 = vunpack.c.l.b16 %v822
        %v914 = vunpack.c.h.b16 %v822
        %v915 = vunpack.c.l.b16 %v823
        %v916 = vunpack.c.h.b16 %v823
        %v917 = vunpack.c.l.b16 %v824
        %v918 = vunpack.c.h.b16 %v824
        %v919 = vunpack.c.l.b16 %v825
        %v920 = vunpack.c.h.b16 %v825
        %v921 = vunpack.c.l.b16 %v826
        %v922 = vunpack.c.h.b16 %v826
        %v923 = vunpack.c.l.b16 %v827
        %v924 = vunpack.c.h.b16 %v827
        %v925 = vunpack.c.l.b16 %v828
        %v926 = vunpack.c.h.b16 %v828
        %v927 = vunpack.c.l.b16 %v829
        %v928 = vunpack.c.h.b16 %v829
        %v929 = vunpack.c.l.b16 %v830
        %v930 = vunpack.c.h.b16 %v830
        %v931 = vunpack.c.l.b16 %v831
        %v932 = vunpack.c.h.b16 %v831
        %v933 = vunpack.c.l.b16 %v832
        %v934 = vunpack.c.h.b16 %v832
        %v935 = vpack.c.b16 %v873, %v871
        %v936 = vpack.c.b16 %v874, %v872
        %v937 = vpack.c.b16 %v877, %v875
        %v938 = vpack.c.b16 %v878, %v876
        %v939 = vpack.c.b16 %v881, %v879
        %v940 = vpack.c.b16 %v882, %v880
        %v941 = vpack.c.b16 %v885, %v883
        %v942 = vpack.c.b16 %v886, %v884
        %v943 = vpack.c.b16 %v889, %v887
        %v944 = vpack.c.b16 %v890, %v888
        %v945 = vpack.c.b16 %v893, %v891
        %v946 = vpack.c.b16 %v894, %v892
        %v947 = vpack.c.b16 %v897, %v895
        %v948 = vpack.c.b16 %v898, %v896
        %v949 = vpack.c.b16 %v901, %v899
        %v950 = vpack.c.b16 %v902, %v900
        %v951 = vpack.c.b16 %v905, %v903
        %v952 = vpack.c.b16 %v906, %v904
        %v953 = vpack.c.b16 %v909, %v907
        %v954 = vpack.c.b16 %v910, %v908
        %v955 = vpack.c.b16 %v913, %v911
        %v956 = vpack.c.b16 %v914, %v912
        %v957 = vpack.c.b16 %v917, %v915
        %v958 = vpack.c.b16 %v918, %v916
        %v959 = vpack.c.b16 %v921, %v919
        %v960 = vpack.c.b16 %v922, %v920
        %v961 = vpack.c.b16 %v925, %v923
        %v962 = vpack.c.b16 %v926, %v924
        %v963 = vpack.c.b16 %v929, %v927
        %v964 = vpack.c.b16 %v930, %v928
        %v965 = vpack.c.b16 %v933, %v931
        %v966 = vpack.c.b16 %v934, %v932
        %999 = vmatpush.bf16.msra.mxu0 %v949
        %1000 = vmatpush.bf16.msra.mxu0 %v947
        %1001 = vmatpush.bf16.msra.mxu0 %v945
        %1002 = vmatpush.bf16.msra.mxu0 %v943
        %1003 = vmatpush.bf16.msra.mxu0 %v941
        %1004 = vmatpush.bf16.msra.mxu0 %v939
        %1005 = vmatpush.bf16.msra.mxu0 %v937
        %1006 = vmatpush.bf16.msra.mxu0 %v935
        %1007 = vmatmul.bf16.gmra.mxu0 %v799
        %v1008 = vpop.f32.mrf.mxu0
        %v1009 = vadd.f32 %v835, %v1008
        %v1010 = vpop.f32.mrf.mxu0
        %1011 = vdwg.mxu0
        %1012 = vmatpush.bf16.msra.mxu0 %v965
        %1013 = vmatpush.bf16.msra.mxu0 %v963
        %1014 = vmatpush.bf16.msra.mxu0 %v961
        %1015 = vmatpush.bf16.msra.mxu0 %v959
        %1016 = vmatpush.bf16.msra.mxu0 %v957
        %1017 = vmatpush.bf16.msra.mxu0 %v955
        %1018 = vmatpush.bf16.msra.mxu0 %v953
        %1019 = vmatpush.bf16.msra.mxu0 %v951
        %1020 = vmatmul.bf16.gmra.mxu0 %v800
        %v1021 = vpop.f32.mrf.mxu0
        %v1022 = vadd.f32 %v1009, %v1021
        %v1023 = vpop.f32.mrf.mxu0
        %1024 = vdwg.mxu0
        %1025 = vmatpush.bf16.msra.mxu0 %v950
        %1026 = vmatpush.bf16.msra.mxu0 %v948
        %1027 = vmatpush.bf16.msra.mxu0 %v946
        %1028 = vmatpush.bf16.msra.mxu0 %v944
        %1029 = vmatpush.bf16.msra.mxu0 %v942
        %1030 = vmatpush.bf16.msra.mxu0 %v940
        %1031 = vmatpush.bf16.msra.mxu0 %v938
        %1032 = vmatpush.bf16.msra.mxu0 %v936
        %1033 = vmatmul.bf16.gmra.mxu0 %v799
        %v1034 = vpop.f32.mrf.mxu0
        %v1035 = vadd.f32 %v836, %v1034
        %v1036 = vpop.f32.mrf.mxu0
        %1037 = vdwg.mxu0
        %1038 = vmatpush.bf16.msra.mxu0 %v966
        %1039 = vmatpush.bf16.msra.mxu0 %v964
        %1040 = vmatpush.bf16.msra.mxu0 %v962
        %1041 = vmatpush.bf16.msra.mxu0 %v960
        %1042 = vmatpush.bf16.msra.mxu0 %v958
        %1043 = vmatpush.bf16.msra.mxu0 %v956
        %1044 = vmatpush.bf16.msra.mxu0 %v954
        %1045 = vmatpush.bf16.msra.mxu0 %v952
        %1046 = vmatmul.bf16.gmra.mxu0 %v800
        %v1047 = vpop.f32.mrf.mxu0
        %v1048 = vadd.f32 %v1035, %v1047
        %v1049 = vpop.f32.mrf.mxu0
        %1050 = vdwg.mxu0
        %v1051 = vmax.f32 %v1022, 0.0
        %v1052 = vmax.f32 %v1048, 0.0
        %v1053 = vsub.f32 0.0, %v768
        %v1054 = vsub.f32 0.0, %v794
        %v1055 = vmul.f32 %v1053, 1.442695
        %v1056 = vpow.pop %v1055
        %v1057 = vmul.f32 %v1054, 1.442695
        %v1058 = vpow.pop %v1057
        %v1059 = vadd.f32 %v1056, 1.0
        %v1060 = vadd.f32 %v1058, 1.0
        %v1061 = vrcp.pop %v1059
        %v1062 = vrcp.pop %v1060
        %v1063 = vunpack.c.l.bf16 %v291
        %v1064 = vunpack.c.h.bf16 %v291
        %v1065 = vsub.f32 %v1051, %v1063
        %v1066 = vsub.f32 %v1052, %v1064
        %v1067 = vmul.f32 %v1061, %v1065
        %v1068 = vmul.f32 %v1062, %v1066
        %v1069 = vadd.f32 %v1063, %v1067
        %v1070 = vadd.f32 %v1064, %v1068
        %1071 = vst [vmem:[%s290] sm:$0xff] %v1069
        %1072 = vst [vmem:[%s290 + $0x8] sm:$0xff] %v1070
        %s1073 = sand.u32 %s142, 1
        %s1074 = scalar_lea.sflag [#allocation4], %s1073
        %s1075 = sand.u32 %s142, 1
        %s1076 = smul.addr %s1075, 16
        %s1077 = scalar_lea.vmem [#allocation10], %s1076
        // Predicated region
        $region57: #{_highway_call.1} parent=39 // pred_check
          %p1078 = pneg %p152
        $region58: #{_highway_call.1} parent=39 // pred_check_branch
          %1080 = sbr.rel (%p1078) target = $region60
        $region59: #{_highway_call.1} parent=39 // pred_region
          %1082 = vsyncadd %s1074, 0
          %s1083 = smul.addr %s24, 2
          %s1084 = smul.addr %s1083, 8
          %s1085 = scalar_lea.hbm %s5, %s1084
          %s1087 = sshll.u32 %s1077, 4
          %s1088 = int_to_ptr.vmem [resolvable:$true] %s1087
          %s1089 = sshll.u32 %s1085, 4
          %s1090 = int_to_ptr.hbm [resolvable:$true] %s1089
          %1092 = dma.vmem_to_hbm [thread:$0]  %s1088, 256, %s1090, %s1074
        $region60: #{_highway_call.1} parent=39 // pred_fallthru
          _
      $region40: #{_highway_call.1} parent=5 // pred_fallthru
        _
      %p1093 = scmp.le.s32.totalorder 2, %s19
      // Predicated region
      $region61: #{_highway_call.1} parent=5 // pred_check
        %p1094 = pneg %p1093
      $region62: #{_highway_call.1} parent=5 // pred_check_branch
        %1096 = sbr.rel (%p1094) target = $region64
      $region63: #{_highway_call.1} parent=5 // pred_region
        %s1097 = ssub.s32 %s19, 2
        // Predicated region
        $region65: #{_highway_call.1} parent=63 // pred_check
          %p1098 = pneg %p158
        $region66: #{_highway_call.1} parent=63 // pred_check_branch
          %1100 = sbr.rel (%p1098) target = $region68
        $region67: #{_highway_call.1} parent=63 // pred_region
          %s1101 = sand.u32 %s143, 1
          %s1102 = scalar_lea.sflag [#allocation4], %s1101
          %s1103 = sand.u32 %s143, 1
          %s1104 = smul.addr %s1103, 16
          %s1105 = scalar_lea.vmem [#allocation10], %s1104
          %1107 = dma.done %s1102, 256
        $region68: #{_highway_call.1} parent=63 // pred_fallthru
          _
      $region64: #{_highway_call.1} parent=5 // pred_fallthru
        _
    $region6: #{_highway_call.1} parent=1 // loop_footer
      %s23 = sadd.s32 1, %s19
    $region7: #{_highway_call.1} parent=1 // loop_footer_branch
      %18 = sbr.rel target = $region3
    $region8: #{_highway_call.1} parent=1 // loop_exit
      _
    %1108 = vsyncpa [#allocation3], 1
    %s1109 = scalar_lea.sflag [#allocation3], 1
    %1110 = vsyncpa %s1109, 1
    %1111 = vsyncpa [#allocation6], 1
    %1112 = vsyncpa [#allocation9], 1
    %1113 = vsyncpa [#allocation4], 1
    %s1114 = scalar_lea.sflag [#allocation4], 1
    %1115 = vsyncpa %s1114, 1

</llo_original>
